<compile_context>
chip_gen: v7x
topology: tpu7x:2x2x1
jax: 0.10.0
libtpu: 0.0.40
codegen_flags: <defaults>
</compile_context>

<pallas_src>
import functools

import jax
import jax.numpy as jnp
import numpy as np
from jax.experimental import pallas as pl
from jax.experimental.pallas import tpu as pltpu


def _round_up(x, m):
    return ((x + m - 1) // m) * m


def _vmem_cap_bytes():
    """Generation-aware VMEM ceiling (v5e/v6e: 128 MiB, v7x: 64 MiB per TC)."""
    try:
        cap = int(pltpu.get_tpu_info().vmem_capacity_bytes)
    except Exception:
        cap = 64 << 20                      # v7x-safe fallback
    return max(cap - (16 << 20), 32 << 20)  # leave headroom for Mosaic scratch


def _vmem_estimate(tb, F, D):
    # double-buffered x / out-slab tiles + resident fused weights + matmul /
    # elementwise temporaries (acts is (tb, 4D) f32) with generous headroom.
    return 4 * (
        2 * tb * F
        + 2 * tb * 2 * D
        + 2 * (F * 4 * D + 4 * D + F + 1)
        + 6 * tb * 4 * D
    )


def _cgc_kernel(x_ref, wall_ref, ball_ref, wgd_ref, bgd_ref, out_ref):
    x = x_ref[...].astype(jnp.float32)                       # (TB, F)
    r = jnp.maximum(x, 0.0)                                   # ExpertNet ReLU

    # One fused MXU pass: columns are [shared | shared | e0 | e1]  -> (TB, 4D)
    acts = jnp.dot(r, wall_ref[...], preferred_element_type=jnp.float32) + ball_ref[...]
    d2 = out_ref.shape[1]                                     # 2*D (128-lane aligned for D=64)
    shared2 = acts[:, :d2]                                    # [shared | shared]
    e_cat = acts[:, d2:]                                      # [e0 | e1]

    # Gate on raw inputs (no ReLU). 2-way softmax: g_task = sigmoid(l1 - l0).
    # VPU multiply + XLU lane-reduce instead of a 2-column MXU matmul.
    d = jnp.sum(x * wgd_ref[...], axis=-1, keepdims=True) + bgd_ref[...]   # (TB, 1)
    g_task = 1.0 / (1.0 + jnp.exp(-d))                        # softmax weight on the task expert

    # out_i = g_shared*shared + g_task*e_i  ==  shared + g_task*(e_i - shared)
    out_ref[...] = (shared2 + g_task * (e_cat - shared2)).astype(out_ref.dtype)


@functools.partial(jax.jit, static_argnames=("tb",))
def cgc_layer_slab(x, ws, bs, w0, b0, w1, b1, wg, bg, *, tb=4096):
    """Returns the fused (B, 2D) output slab [out0 | out1] (lane-dense)."""
    B, F = x.shape
    D = ws.shape[1]

    # --- one-time weight prep (tiny XLA ops outside the kernel) ---
    w_all = jnp.concatenate([ws, ws, w0, w1], axis=1)         # (F, 4D)
    b_all = jnp.concatenate([bs, bs, b0, b1], axis=1)         # (1, 4D)
    wg_diff = (wg[:, 1] - wg[:, 0]).reshape(1, F)             # (1, F)
    bg_diff = (bg[:, 1] - bg[:, 0]).reshape(1, 1)             # (1, 1)

    # --- batch tiling: NO input padding; Pallas masks the ragged last tile ---
    tb = max(8, _round_up(min(tb, _round_up(B, 8)), 8))
    if B >= 16:
        # keep >= 2 grid steps so both v7x TensorCores get work (harmless on v5e/v6e)
        tb = min(tb, _round_up(pl.cdiv(_round_up(B, 8), 2), 8))

    cap = _vmem_cap_bytes()
    while _vmem_estimate(tb, F, D) > cap and tb > 512:
        tb = _round_up(max(tb // 2, 512), 8)
    vmem_bytes = int(min(max(_vmem_estimate(tb, F, D), 4 << 20), cap))

    grid = (pl.cdiv(B, tb),)

    return pl.pallas_call(
        _cgc_kernel,
        out_shape=jax.ShapeDtypeStruct((B, 2 * D), x.dtype),
        grid=grid,
        in_specs=[
            pl.BlockSpec((tb, F), lambda i: (i, 0)),          # x: streamed over batch
            pl.BlockSpec((F, 4 * D), lambda i: (0, 0)),       # fused expert weights (resident)
            pl.BlockSpec((1, 4 * D), lambda i: (0, 0)),       # fused biases
            pl.BlockSpec((1, F), lambda i: (0, 0)),           # gate weight difference row
            pl.BlockSpec((1, 1), lambda i: (0, 0)),           # gate bias difference
        ],
        out_specs=pl.BlockSpec((tb, 2 * D), lambda i: (i, 0)),  # lane-dense (o0 | o1) slab
        compiler_params=pltpu.CompilerParams(
            dimension_semantics=("parallel",),
            vmem_limit_bytes=vmem_bytes,
        ),
    )(x, w_all, b_all, wg_diff, bg_diff)


def cgc_layer(x, ws, bs, w0, b0, w1, b1, wg, bg, *, tb=4096):
    """Module-compatible API: returns (out0, out1).

    NOTE: the split below materializes two copies of the output; consumers that
    can take the fused (B, 2D) slab (or its free (B, 2, D) reshape) should call
    cgc_layer_slab directly to avoid the extra HBM round-trip.
    """
    D = ws.shape[1]
    slab = cgc_layer_slab(x, ws, bs, w0, b0, w1, b1, wg, bg, tb=tb)
    return slab[:, :D], slab[:, D:]


def _reference(x, ws, bs, w0, b0, w1, b1, wg, bg):
    r = jnp.maximum(x, 0.0)
    shared = r @ ws + bs
    e0 = r @ w0 + b0
    e1 = r @ w1 + b1
    g = jax.nn.softmax(x @ wg + bg, axis=-1)
    out0 = g[:, 0:1] * shared + g[:, 1:2] * e0
    out1 = g[:, 0:1] * shared + g[:, 1:2] * e1
    return out0, out1


if __name__ == "__main__":
    B, F, D = 256, 32, 64        # batch, feature_dim, task_dim (module default task_dim=64)
    G = 2                         # 1 task expert + 1 shared expert per gate

    key = jax.random.PRNGKey(0)
    ks = jax.random.split(key, 10)
    scale = 1.0 / np.sqrt(F)

    x = jax.random.normal(ks[0], (B, F), jnp.float32)
    ws = jax.random.normal(ks[1], (F, D), jnp.float32) * scale   # shared expert
    bs = jax.random.normal(ks[2], (1, D), jnp.float32) * 0.1
    w0 = jax.random.normal(ks[3], (F, D), jnp.float32) * scale   # task-0 expert
    b0 = jax.random.normal(ks[4], (1, D), jnp.float32) * 0.1
    w1 = jax.random.normal(ks[5], (F, D), jnp.float32) * scale   # task-1 expert
    b1 = jax.random.normal(ks[6], (1, D), jnp.float32) * 0.1
    wg = jax.random.normal(ks[7], (F, G), jnp.float32) * scale   # single shared gate
    bg = jax.random.normal(ks[8], (1, G), jnp.float32) * 0.1

    # Default tb=4096 gets clamped to 128 at B=256 (>=2 grid steps for v7x megacore).
    out0, out1 = cgc_layer(x, ws, bs, w0, b0, w1, b1, wg, bg)
    jax.block_until_ready((out0, out1))

    ref0, ref1 = _reference(x, ws, bs, w0, b0, w1, b1, wg, bg)
    np.testing.assert_allclose(np.asarray(out0), np.asarray(ref0), rtol=1e-5, atol=1e-5)
    np.testing.assert_allclose(np.asarray(out1), np.asarray(ref1), rtol=1e-5, atol=1e-5)

    print("KERNEL_OK")
</pallas_src>

<mosaic_0001>
module attributes {stable_mosaic.version = 11 : i64} {
  func.func @_cgc_kernel(%arg0: i32, %arg1: memref<128x32xf32, #tpu.memory_space<vmem>>, %arg2: memref<32x256xf32, #tpu.memory_space<vmem>>, %arg3: memref<1x256xf32, #tpu.memory_space<vmem>>, %arg4: memref<1x32xf32, #tpu.memory_space<vmem>>, %arg5: memref<1x1xf32, #tpu.memory_space<vmem>>, %arg6: memref<128x128xf32, #tpu.memory_space<vmem>>) attributes {dimension_semantics = [#tpu.dimension_semantics<parallel>], iteration_bounds = array<i64: 2>, scalar_prefetch = 0 : i64, scratch_operands = 0 : i64, tpu.core_type = #tpu.core_type<tc>, window_params = [{transform_indices = @transform_0, window_bounds = array<i64: 128, 32>}, {pipeline_mode = #tpu.pipeline_mode<synchronous>, transform_indices = @transform_1, window_bounds = array<i64: 32, 256>}, {pipeline_mode = #tpu.pipeline_mode<synchronous>, transform_indices = @transform_2, window_bounds = array<i64: 1, 256>}, {pipeline_mode = #tpu.pipeline_mode<synchronous>, transform_indices = @transform_3, window_bounds = array<i64: 1, 32>}, {pipeline_mode = #tpu.pipeline_mode<synchronous>, transform_indices = @transform_4, window_bounds = array<i64: 1, 1>}, {transform_indices = @transform_5, window_bounds = array<i64: 128, 128>}]} {
    %c0 = arith.constant 0 : index
    %c0_0 = arith.constant 0 : index
    %0 = vector.load %arg1[%c0, %c0_0] : memref<128x32xf32, #tpu.memory_space<vmem>>, vector<128x32xf32>
    %cst = arith.constant 0.000000e+00 : f32
    %1 = vector.broadcast %cst : f32 to vector<128x32xf32>
    %2 = arith.maximumf %0, %1 : vector<128x32xf32>
    %c0_1 = arith.constant 0 : index
    %c0_2 = arith.constant 0 : index
    %3 = vector.load %arg2[%c0_1, %c0_2] : memref<32x256xf32, #tpu.memory_space<vmem>>, vector<32x256xf32>
    %cst_3 = arith.constant dense<0.000000e+00> : vector<128x256xf32>
    %4 = tpu.matmul %2, %3, %cst_3 {dimension_numbers = #tpu.dot_dimension_numbers<[1], [0], [0], [1], [0, 0, 1, 1], [], []>} : vector<128x32xf32>, vector<32x256xf32>, vector<128x256xf32> -> vector<128x256xf32>
    %c0_4 = arith.constant 0 : index
    %c0_5 = arith.constant 0 : index
    %5 = vector.load %arg3[%c0_4, %c0_5] : memref<1x256xf32, #tpu.memory_space<vmem>>, vector<1x256xf32>
    %6 = vector.broadcast %5 : vector<1x256xf32> to vector<128x256xf32>
    %7 = arith.addf %4, %6 : vector<128x256xf32>
    %8 = vector.extract_strided_slice %7 {offsets = [0, 0], sizes = [128, 128], strides = [1, 1]} : vector<128x256xf32> to vector<128x128xf32>
    %9 = vector.extract_strided_slice %7 {offsets = [0, 128], sizes = [128, 128], strides = [1, 1]} : vector<128x256xf32> to vector<128x128xf32>
    %c0_6 = arith.constant 0 : index
    %c0_7 = arith.constant 0 : index
    %10 = vector.load %arg4[%c0_6, %c0_7] : memref<1x32xf32, #tpu.memory_space<vmem>>, vector<1x32xf32>
    %11 = vector.broadcast %10 : vector<1x32xf32> to vector<128x32xf32>
    %12 = arith.mulf %0, %11 : vector<128x32xf32>
    %cst_8 = arith.constant dense<0.000000e+00> : vector<128xf32>
    %13 = vector.multi_reduction <add>, %12, %cst_8 [1] : vector<128x32xf32> to vector<128xf32>
    %14 = vector.shape_cast %13 : vector<128xf32> to vector<128x1xf32>
    %c0_9 = arith.constant 0 : index
    %c0_10 = arith.constant 0 : index
    %15 = vector.load %arg5[%c0_9, %c0_10] : memref<1x1xf32, #tpu.memory_space<vmem>>, vector<1x1xf32>
    %16 = vector.broadcast %15 : vector<1x1xf32> to vector<128x1xf32>
    %17 = arith.addf %14, %16 : vector<128x1xf32>
    %cst_11 = arith.constant 0.000000e+00 : f32
    %18 = vector.broadcast %cst_11 : f32 to vector<128x1xf32>
    %19 = arith.subf %18, %17 : vector<128x1xf32>
    %20 = math.exp %19 : vector<128x1xf32>
    %cst_12 = arith.constant 1.000000e+00 : f32
    %21 = vector.broadcast %cst_12 : f32 to vector<128x1xf32>
    %22 = arith.addf %21, %20 : vector<128x1xf32>
    %cst_13 = arith.constant 1.000000e+00 : f32
    %23 = vector.broadcast %cst_13 : f32 to vector<128x1xf32>
    %24 = arith.divf %23, %22 : vector<128x1xf32>
    %25 = arith.subf %9, %8 : vector<128x128xf32>
    %26 = vector.broadcast %24 : vector<128x1xf32> to vector<128x128xf32>
    %27 = arith.mulf %26, %25 : vector<128x128xf32>
    %28 = arith.addf %8, %27 : vector<128x128xf32>
    %c0_14 = arith.constant 0 : index
    %c0_15 = arith.constant 0 : index
    %29 = vector.load %arg6[%c0_14, %c0_15] : memref<128x128xf32, #tpu.memory_space<vmem>>, vector<128x128xf32>
    tpu.vector_store %arg6[%c0_14, %c0_15], %28 {strides = array<i32>} : memref<128x128xf32, #tpu.memory_space<vmem>>, vector<128x128xf32>,
    return
  }
  func.func @transform_0(%arg0: i32) -> (i32, i32) {
    %c0_i32 = arith.constant 0 : i32
    %c0_i32_0 = arith.constant 0 : i32
    return %arg0, %c0_i32 : i32, i32
  }
  func.func @transform_1(%arg0: i32) -> (i32, i32) {
    %c0_i32 = arith.constant 0 : i32
    %c0_i32_0 = arith.constant 0 : i32
    %c0_i32_1 = arith.constant 0 : i32
    return %c0_i32, %c0_i32_0 : i32, i32
  }
  func.func @transform_2(%arg0: i32) -> (i32, i32) {
    %c0_i32 = arith.constant 0 : i32
    %c0_i32_0 = arith.constant 0 : i32
    %c0_i32_1 = arith.constant 0 : i32
    return %c0_i32, %c0_i32_0 : i32, i32
  }
  func.func @transform_3(%arg0: i32) -> (i32, i32) {
    %c0_i32 = arith.constant 0 : i32
    %c0_i32_0 = arith.constant 0 : i32
    %c0_i32_1 = arith.constant 0 : i32
    return %c0_i32, %c0_i32_0 : i32, i32
  }
  func.func @transform_4(%arg0: i32) -> (i32, i32) {
    %c0_i32 = arith.constant 0 : i32
    %c0_i32_0 = arith.constant 0 : i32
    %c0_i32_1 = arith.constant 0 : i32
    return %c0_i32, %c0_i32_0 : i32, i32
  }
  func.func @transform_5(%arg0: i32) -> (i32, i32) {
    %c0_i32 = arith.constant 0 : i32
    %c0_i32_0 = arith.constant 0 : i32
    return %arg0, %c0_i32 : i32, i32
  }
}

</mosaic_0001>

<llo_original>
// kernel: cgc_layer_slab.1
$region0: #{cgc_layer_slab.1}
  #allocation0 [shape = 'u32[]', space=smem, size = 0x4, offset = 0x4, fixed_abs, tag = 'smem constant byte address 0x4 - core index']
  #allocation1 [shape = 'u32[144,128]{1,0:T(1,128)}', space=vmem, size = 0x12000, scoped, tag = 'internal scratch']
  #allocation2 [shape = 'f32[1,1]{1,0:T(1,128)S(1)}', space=vmem, size = 0x200, scoped, tag = 'scoped memory for cgc_layer_slab.1']
  %s0 = inlined_call_operand.vmem [shape: f32[256,32], index: 0, kind: input, shape index: {}]
  %s1 = inlined_call_operand.vmem [shape: f32[32,256], index: 1, kind: input, shape index: {}]
  %s2 = inlined_call_operand.vmem [shape: f32[1,256], index: 2, kind: input, shape index: {}]
  %s3 = inlined_call_operand.vmem [shape: f32[1,32], index: 3, kind: input, shape index: {}]
  %s4 = inlined_call_operand.<no memory space> [shape: f32[1,1], index: 4, kind: input, shape index: {}]
  %s5 = inlined_call_operand.hbm [shape: f32[256,128], index: 5, kind: output, shape index: {}]
  %s6 = sld [smem:[#allocation0]]
  $region53: #{cgc_layer_slab.1} parent=0
    _
  %s8 = ssub.s32 1, %s6
  %s9 = scalar_select 0, %s8, %s6
  %v10 = vstv %s4
  %11 = vst [vmem:[#allocation2] sm:$0x1] %v10
  $region1: #{cgc_layer_slab.1} parent=0
    #allocation3 [shape = 'u8[131072]{0}', space=vmem, size = 0x20000, scoped, tag = 'output window, operand 0']
    #allocation4 [shape = 's32[2]{0}', space=sflag, size = 0x8, scoped, tag = 'scoped memory for cgc_layer_slab.1']
    %12 = vsyncpa [#allocation4], 0
    %s13 = scalar_lea.sflag [#allocation4], 1
    %14 = vsyncpa %s13, 0
    loop: start=0, step=1, limit=4
    $region2: #{cgc_layer_slab.1} parent=1 // loop_pre_header
      _
    $region3: #{cgc_layer_slab.1} parent=1 // loop_header
      %s16 = sphi 0, %s20
      %p17 = scmp.ge.s32.totalorder %s16, 4
      %s26 = sphi 0, %s28
      %s29 = sphi 0, %s26
      %s30 = sphi 0, %s29
      %s46 = sphi 0, %s30
      %s50 = sphi 0, %s50
      %s52 = sphi 0, %s50
      %s53 = sphi 0, %s52
      %s67 = sphi 0, %s53
      %s71 = sphi 0, %s71
      %s73 = sphi 0, %s71
      %s74 = sphi 0, %s73
      %s88 = sphi 0, %s74
      %s92 = sphi 0, %s92
      %s94 = sphi 0, %s92
      %s95 = sphi 0, %s94
      %s109 = sphi 0, %s95
      %s113 = sphi 0, %s113
      %s115 = sphi 0, %s113
      %s116 = sphi 0, %s115
      %s130 = sphi 0, %s116
      %s136 = sphi 0, %s138
      %s139 = sphi 0, %s136
      %s140 = sphi 0, %s139
      %s156 = sphi 0, %s140
    $region4: #{cgc_layer_slab.1} parent=1 // loop_header_branch
      %19 = sbr.rel (%p17) target = $region8
    $region5: #{cgc_layer_slab.1} parent=1 // loop_body
      %s21 = ssub.s32 %s16, 1
      %s22 = ssub.s32 %s16, 2
      %s23 = sadd.s32 %s16, 1
      %s24 = ssub.s32 %s16, %s23
      %p25 = scmp.eq.s32.totalorder %s24, 0
      %s27 = sadd.s32 %s26, 1
      %s28 = scalar_select %p25, %s26, %s27
      %p31 = pneg %p25
      %p32 = scmp.eq.s32.totalorder %s16, 1
      %p33 = por %p31, %p32
      %p34 = scmp.ne.s32.totalorder %s26, %s29
      %p35 = scmp.eq.s32.totalorder %s16, 0
      %p36 = por %p34, %p35
      %p37 = scmp.ne.s32.totalorder %s26, %s29
      %p38 = scmp.eq.s32.totalorder %s21, 1
      %p39 = por %p37, %p38
      %p40 = scmp.ne.s32.totalorder %s29, %s30
      %p41 = scmp.eq.s32.totalorder %s21, 0
      %p42 = por %p40, %p41
      %p43 = scmp.ne.s32.totalorder %s29, %s30
      %p44 = scmp.eq.s32.totalorder %s22, 1
      %p45 = por %p43, %p44
      %p47 = scmp.ne.s32.totalorder %s30, %s46
      %p48 = scmp.eq.s32.totalorder %s22, 0
      %p49 = por %p47, %p48
      %s51 = sadd.s32 %s50, 1
      %p54 = scmp.eq.s32.totalorder %s16, 1
      %p55 = scmp.ne.s32.totalorder %s50, %s52
      %p56 = scmp.eq.s32.totalorder %s16, 0
      %p57 = por %p55, %p56
      %p58 = scmp.ne.s32.totalorder %s50, %s52
      %p59 = scmp.eq.s32.totalorder %s21, 1
      %p60 = por %p58, %p59
      %p61 = scmp.ne.s32.totalorder %s52, %s53
      %p62 = scmp.eq.s32.totalorder %s21, 0
      %p63 = por %p61, %p62
      %p64 = scmp.ne.s32.totalorder %s52, %s53
      %p65 = scmp.eq.s32.totalorder %s22, 1
      %p66 = por %p64, %p65
      %p68 = scmp.ne.s32.totalorder %s53, %s67
      %p69 = scmp.eq.s32.totalorder %s22, 0
      %p70 = por %p68, %p69
      %s72 = sadd.s32 %s71, 1
      %p75 = scmp.eq.s32.totalorder %s16, 1
      %p76 = scmp.ne.s32.totalorder %s71, %s73
      %p77 = scmp.eq.s32.totalorder %s16, 0
      %p78 = por %p76, %p77
      %p79 = scmp.ne.s32.totalorder %s71, %s73
      %p80 = scmp.eq.s32.totalorder %s21, 1
      %p81 = por %p79, %p80
      %p82 = scmp.ne.s32.totalorder %s73, %s74
      %p83 = scmp.eq.s32.totalorder %s21, 0
      %p84 = por %p82, %p83
      %p85 = scmp.ne.s32.totalorder %s73, %s74
      %p86 = scmp.eq.s32.totalorder %s22, 1
      %p87 = por %p85, %p86
      %p89 = scmp.ne.s32.totalorder %s74, %s88
      %p90 = scmp.eq.s32.totalorder %s22, 0
      %p91 = por %p89, %p90
      %s93 = sadd.s32 %s92, 1
      %p96 = scmp.eq.s32.totalorder %s16, 1
      %p97 = scmp.ne.s32.totalorder %s92, %s94
      %p98 = scmp.eq.s32.totalorder %s16, 0
      %p99 = por %p97, %p98
      %p100 = scmp.ne.s32.totalorder %s92, %s94
      %p101 = scmp.eq.s32.totalorder %s21, 1
      %p102 = por %p100, %p101
      %p103 = scmp.ne.s32.totalorder %s94, %s95
      %p104 = scmp.eq.s32.totalorder %s21, 0
      %p105 = por %p103, %p104
      %p106 = scmp.ne.s32.totalorder %s94, %s95
      %p107 = scmp.eq.s32.totalorder %s22, 1
      %p108 = por %p106, %p107
      %p110 = scmp.ne.s32.totalorder %s95, %s109
      %p111 = scmp.eq.s32.totalorder %s22, 0
      %p112 = por %p110, %p111
      %s114 = sadd.s32 %s113, 1
      %p117 = scmp.eq.s32.totalorder %s16, 1
      %p118 = scmp.ne.s32.totalorder %s113, %s115
      %p119 = scmp.eq.s32.totalorder %s16, 0
      %p120 = por %p118, %p119
      %p121 = scmp.ne.s32.totalorder %s113, %s115
      %p122 = scmp.eq.s32.totalorder %s21, 1
      %p123 = por %p121, %p122
      %p124 = scmp.ne.s32.totalorder %s115, %s116
      %p125 = scmp.eq.s32.totalorder %s21, 0
      %p126 = por %p124, %p125
      %p127 = scmp.ne.s32.totalorder %s115, %s116
      %p128 = scmp.eq.s32.totalorder %s22, 1
      %p129 = por %p127, %p128
      %p131 = scmp.ne.s32.totalorder %s116, %s130
      %p132 = scmp.eq.s32.totalorder %s22, 0
      %p133 = por %p131, %p132
      %s134 = ssub.s32 %s16, %s23
      %p135 = scmp.eq.s32.totalorder %s134, 0
      %s137 = sadd.s32 %s136, 1
      %s138 = scalar_select %p135, %s136, %s137
      %p141 = pneg %p135
      %p142 = scmp.eq.s32.totalorder %s16, 1
      %p143 = por %p141, %p142
      %p144 = scmp.ne.s32.totalorder %s136, %s139
      %p145 = scmp.eq.s32.totalorder %s16, 0
      %p146 = por %p144, %p145
      %p147 = scmp.ne.s32.totalorder %s136, %s139
      %p148 = scmp.eq.s32.totalorder %s21, 1
      %p149 = por %p147, %p148
      %p150 = scmp.ne.s32.totalorder %s139, %s140
      %p151 = scmp.eq.s32.totalorder %s21, 0
      %p152 = por %p150, %p151
      %p153 = scmp.ne.s32.totalorder %s139, %s140
      %p154 = scmp.eq.s32.totalorder %s22, 1
      %p155 = por %p153, %p154
      %p157 = scmp.ne.s32.totalorder %s140, %s156
      %p158 = scmp.eq.s32.totalorder %s22, 0
      %p159 = por %p157, %p158
      %p160 = scmp.le.s32.totalorder 1, %s16
      %p161 = scmp.lt.s32.totalorder %s16, 3
      %p162 = pnand %p160, %p161
      %p163 = pneg %p162
      // Predicated region
      $region9: #{cgc_layer_slab.1} parent=5 // pred_check
        _
      $region10: #{cgc_layer_slab.1} parent=5 // pred_check_branch
        %165 = sbr.rel (%p162) target = $region12
      $region11: #{cgc_layer_slab.1} parent=5 // pred_region
        %s166 = ssub.s32 %s16, 1
        // Predicated region
        $region13: #{cgc_layer_slab.1} parent=11 // pred_check
          %p167 = pneg %p63
        $region14: #{cgc_layer_slab.1} parent=11 // pred_check_branch
          %169 = sbr.rel (%p167) target = $region16
        $region15: #{cgc_layer_slab.1} parent=11 // pred_region
          _
        $region16: #{cgc_layer_slab.1} parent=11 // pred_fallthru
          _
        // Predicated region
        $region17: #{cgc_layer_slab.1} parent=11 // pred_check
          %p170 = pneg %p84
        $region18: #{cgc_layer_slab.1} parent=11 // pred_check_branch
          %172 = sbr.rel (%p170) target = $region20
        $region19: #{cgc_layer_slab.1} parent=11 // pred_region
          _
        $region20: #{cgc_layer_slab.1} parent=11 // pred_fallthru
          _
        // Predicated region
        $region21: #{cgc_layer_slab.1} parent=11 // pred_check
          %p173 = pneg %p105
        $region22: #{cgc_layer_slab.1} parent=11 // pred_check_branch
          %175 = sbr.rel (%p173) target = $region24
        $region23: #{cgc_layer_slab.1} parent=11 // pred_region
          _
        $region24: #{cgc_layer_slab.1} parent=11 // pred_fallthru
          _
        // Predicated region
        $region25: #{cgc_layer_slab.1} parent=11 // pred_check
          %p176 = pneg %p126
        $region26: #{cgc_layer_slab.1} parent=11 // pred_check_branch
          %178 = sbr.rel (%p176) target = $region28
        $region27: #{cgc_layer_slab.1} parent=11 // pred_region
          _
        $region28: #{cgc_layer_slab.1} parent=11 // pred_fallthru
          _
      $region12: #{cgc_layer_slab.1} parent=5 // pred_fallthru
        _
      %p179 = scmp.lt.s32.totalorder %s16, 2
      // Predicated region
      $region29: #{cgc_layer_slab.1} parent=5 // pred_check
        %p180 = pneg %p179
      $region30: #{cgc_layer_slab.1} parent=5 // pred_check_branch
        %182 = sbr.rel (%p180) target = $region32
      $region31: #{cgc_layer_slab.1} parent=5 // pred_region
        // Predicated region
        $region33: #{cgc_layer_slab.1} parent=31 // pred_check
          %p183 = pneg %p36
        $region34: #{cgc_layer_slab.1} parent=31 // pred_check_branch
          %185 = sbr.rel (%p183) target = $region36
        $region35: #{cgc_layer_slab.1} parent=31 // pred_region
          %s186 = smul.u32 16, %s16
          %p187 = scmp.lt.s32.totalorder %s186, 31
          %s188 = scalar_select %p187, %s186, 31
          %s189 = smul.addr %s188, 8
          %s190 = scalar_lea.vmem %s0, %s189
          %s191 = smul.u32 16, %s16
        $region36: #{cgc_layer_slab.1} parent=31 // pred_fallthru
          _
      $region32: #{cgc_layer_slab.1} parent=5 // pred_fallthru
        _
      %p192 = scmp.le.s32.totalorder 1, %s16
      %p193 = scmp.lt.s32.totalorder %s16, 3
      %p194 = pnand %p192, %p193
      %p195 = pneg %p194
      // Predicated region
      $region37: #{cgc_layer_slab.1} parent=5 // pred_check
        _
      $region38: #{cgc_layer_slab.1} parent=5 // pred_check_branch
        %197 = sbr.rel (%p194) target = $region40
      $region39: #{cgc_layer_slab.1} parent=5 // pred_region
        %s198 = ssub.s32 %s16, 1
        %s199 = smul.u32 16, %s21
        %p200 = scmp.lt.s32.totalorder %s199, 31
        %s201 = scalar_select %p200, %s199, 31
        %s202 = smul.addr %s201, 8
        %s203 = scalar_lea.vmem %s0, %s202
        %p204 = pneg %p42
        %p205 = pneg %p39
        %p206 = pneg %p63
        %p207 = pneg %p60
        %p208 = pneg %p84
        %p209 = pneg %p81
        %p210 = pneg %p105
        %p211 = pneg %p102
        %p212 = pneg %p126
        %p213 = pneg %p123
        %p214 = pneg %p152
        %p215 = pneg %p149
        %s216 = sand.u32 %s139, 1
        %s217 = scalar_lea.sflag [#allocation4], %s216
        %s218 = sand.u32 %s139, 1
        %s219 = smul.addr %s218, 128
        %s220 = scalar_lea.vmem [#allocation3], %s219
        %s221 = smul.u32 16, %s21
        %p222 = scmp.lt.s32.totalorder %s221, 31
        %s223 = scalar_select %p222, %s221, 31
        %s224 = smul.addr %s223, 8
        %s225 = scalar_lea.vmem %s0, %s224
        %s226 = smul.u32 16, %s21
        %s227 = smul.u32 16, %s21
        %v228 = vld [vmem:[%s225] sm:$0xff]
        %v229 = vld [vmem:[%s225 + $0x8] sm:$0xff]
        %v230 = vld [vmem:[%s225 + $0x10] sm:$0xff]
        %v231 = vld [vmem:[%s225 + $0x18] sm:$0xff]
        %v232 = vld [vmem:[%s225 + $0x20] sm:$0xff]
        %v233 = vld [vmem:[%s225 + $0x28] sm:$0xff]
        %v234 = vld [vmem:[%s225 + $0x30] sm:$0xff]
        %v235 = vld [vmem:[%s225 + $0x38] sm:$0xff]
        %v236 = vld [vmem:[%s225 + $0x40] sm:$0xff]
        %v237 = vld [vmem:[%s225 + $0x48] sm:$0xff]
        %v238 = vld [vmem:[%s225 + $0x50] sm:$0xff]
        %v239 = vld [vmem:[%s225 + $0x58] sm:$0xff]
        %v240 = vld [vmem:[%s225 + $0x60] sm:$0xff]
        %v241 = vld [vmem:[%s225 + $0x68] sm:$0xff]
        %v242 = vld [vmem:[%s225 + $0x70] sm:$0xff]
        %v243 = vld [vmem:[%s225 + $0x78] sm:$0xff]
        %v244 = vmax.f32 %v228, 0.0
        %v245 = vmax.f32 %v229, 0.0
        %v246 = vmax.f32 %v230, 0.0
        %v247 = vmax.f32 %v231, 0.0
        %v248 = vmax.f32 %v232, 0.0
        %v249 = vmax.f32 %v233, 0.0
        %v250 = vmax.f32 %v234, 0.0
        %v251 = vmax.f32 %v235, 0.0
        %v252 = vmax.f32 %v236, 0.0
        %v253 = vmax.f32 %v237, 0.0
        %v254 = vmax.f32 %v238, 0.0
        %v255 = vmax.f32 %v239, 0.0
        %v256 = vmax.f32 %v240, 0.0
        %v257 = vmax.f32 %v241, 0.0
        %v258 = vmax.f32 %v242, 0.0
        %v259 = vmax.f32 %v243, 0.0
        %v260 = vld [vmem:[%s1] sm:$0xff]
        %v261 = vld [vmem:[%s1 + $0x8] sm:$0xff]
        %v262 = vld [vmem:[%s1 + $0x10] sm:$0xff]
        %v263 = vld [vmem:[%s1 + $0x18] sm:$0xff]
        %v264 = vld [vmem:[%s1 + $0x20] sm:$0xff]
        %v265 = vld [vmem:[%s1 + $0x28] sm:$0xff]
        %v266 = vld [vmem:[%s1 + $0x30] sm:$0xff]
        %v267 = vld [vmem:[%s1 + $0x38] sm:$0xff]
        %v268 = vld [vmem:[%s2] sm:$0x3]
        %v270 = vlaneseq
        %v271 = vshrl.u32 %v270, 7
        %v272 = vsub.s32 0, %v271
        %v273 = vrot.slane %v268, %v272
        %v274 = vlaneseq
        %v275 = vshrl.u32 %v274, 7
        %v276 = vsub.s32 1, %v275
        %v277 = vrot.slane %v268, %v276
        %vm280 = vcmask 261120
        %v282 = vsel %vm280, %v244, 0
        %v285 = vsel %vm280, %v245, 0
        %v288 = vsel %vm280, %v246, 0
        %v291 = vsel %vm280, %v247, 0
        %v294 = vsel %vm280, %v248, 0
        %v297 = vsel %vm280, %v249, 0
        %v300 = vsel %vm280, %v250, 0
        %v303 = vsel %vm280, %v251, 0
        %v306 = vsel %vm280, %v252, 0
        %v309 = vsel %vm280, %v253, 0
        %v312 = vsel %vm280, %v254, 0
        %v315 = vsel %vm280, %v255, 0
        %v318 = vsel %vm280, %v256, 0
        %v321 = vsel %vm280, %v257, 0
        %v324 = vsel %vm280, %v258, 0
        %v327 = vsel %vm280, %v259, 0
        %329 = vmatprep.subr.mxu0 %v261
        %330 = vmatpush1.msra.mxu0 %v260
        %331 = vmatprep.subr.mxu0 %v263
        %332 = vmatpush1.msra.mxu0 %v262
        %333 = vmatprep.subr.mxu0 %v265
        %334 = vmatpush1.msra.mxu0 %v264
        %335 = vmatprep.subr.mxu0 %v267
        %336 = vmatpush1.msra.mxu0 %v266
        %337 = vmatprep.subr.mxu0 0.0
        %338 = vmatpush1.msra.mxu0 0.0
        %339 = vmatprep.subr.mxu0 0.0
        %340 = vmatpush1.msra.mxu0 0.0
        %341 = vmatprep.subr.mxu0 0.0
        %342 = vmatpush1.msra.mxu0 0.0
        %343 = vmatprep.subr.mxu0 0.0
        %344 = vmatpush1.msra.mxu0 0.0
        %345 = vmatprep.subr.mxu0 0.0
        %346 = vmatpush1.msra.mxu0 0.0
        %347 = vmatprep.subr.mxu0 0.0
        %348 = vmatpush1.msra.mxu0 0.0
        %349 = vmatprep.subr.mxu0 0.0
        %350 = vmatpush1.msra.mxu0 0.0
        %351 = vmatprep.subr.mxu0 0.0
        %352 = vmatpush1.msra.mxu0 0.0
        %353 = vmatprep.subr.mxu0 0.0
        %354 = vmatpush1.msra.mxu0 0.0
        %355 = vmatprep.subr.mxu0 0.0
        %356 = vmatpush1.msra.mxu0 0.0
        %357 = vmatprep.subr.mxu0 0.0
        %358 = vmatpush1.msra.mxu0 0.0
        %359 = vmatprep.subr.mxu0 0.0
        %360 = vmatpush1.msra.mxu0 0.0
        %361 = vmatprep.subr.mxu0 0.0
        %362 = vmatpush1.msra.mxu0 0.0
        %363 = vmatprep.subr.mxu0 0.0
        %364 = vmatpush1.msra.mxu0 0.0
        %365 = vmatprep.subr.mxu0 0.0
        %366 = vmatpush1.msra.mxu0 0.0
        %367 = vmatprep.subr.mxu0 0.0
        %368 = vmatpush1.msra.mxu0 0.0
        %369 = vmatprep.subr.mxu0 0.0
        %370 = vmatpush1.msra.mxu0 0.0
        %371 = vmatprep.subr.mxu0 0.0
        %372 = vmatpush1.msra.mxu0 0.0
        %373 = vmatprep.subr.mxu0 0.0
        %374 = vmatpush1.msra.mxu0 0.0
        %375 = vmatprep.subr.mxu0 0.0
        %376 = vmatpush1.msra.mxu0 0.0
        %377 = vmatprep.subr.mxu0 0.0
        %378 = vmatpush1.msra.mxu0 0.0
        %379 = vmatprep.subr.mxu0 0.0
        %380 = vmatpush1.msra.mxu0 0.0
        %381 = vmatprep.subr.mxu0 0.0
        %382 = vmatpush1.msra.mxu0 0.0
        %383 = vmatprep.subr.mxu0 0.0
        %384 = vmatpush1.msra.mxu0 0.0
        %385 = vmatprep.subr.mxu0 0.0
        %386 = vmatpush1.msra.mxu0 0.0
        %387 = vmatprep.subr.mxu0 0.0
        %388 = vmatpush1.msra.mxu0 0.0
        %389 = vmatprep.subr.mxu0 0.0
        %390 = vmatpush1.msra.mxu0 0.0
        %391 = vmatprep.subr.mxu0 0.0
        %392 = vmatpush1.msra.mxu0 0.0
        %393 = vmatprep.mubr.f32.mxu0 0.0
        %394 = vmatmul.mubr.f32.gmra.mrb[0].mxu0 %v282
        %v395 = vpop.f32.mrb[0].mxu0
        %v396 = vadd.f32 %v273, %v395
        %v397 = vpop.f32.mrb[0].mxu0
        %v398 = vadd.f32 %v277, %v397
        %399 = vmatprep.mubr.f32.mxu0 0.0
        %400 = vmatmul.mubr.f32.gmra.mrb[0].mxu0 %v285
        %v401 = vpop.f32.mrb[0].mxu0
        %v402 = vadd.f32 %v273, %v401
        %v403 = vpop.f32.mrb[0].mxu0
        %v404 = vadd.f32 %v277, %v403
        %405 = vmatprep.mubr.f32.mxu0 0.0
        %406 = vmatmul.mubr.f32.gmra.mrb[0].mxu0 %v288
        %v407 = vpop.f32.mrb[0].mxu0
        %v408 = vadd.f32 %v273, %v407
        %v409 = vpop.f32.mrb[0].mxu0
        %v410 = vadd.f32 %v277, %v409
        %411 = vmatprep.mubr.f32.mxu0 0.0
        %412 = vmatmul.mubr.f32.gmra.mrb[0].mxu0 %v291
        %v413 = vpop.f32.mrb[0].mxu0
        %v414 = vadd.f32 %v273, %v413
        %v415 = vpop.f32.mrb[0].mxu0
        %v416 = vadd.f32 %v277, %v415
        %417 = vmatprep.mubr.f32.mxu0 0.0
        %418 = vmatmul.mubr.f32.gmra.mrb[0].mxu0 %v294
        %v419 = vpop.f32.mrb[0].mxu0
        %v420 = vadd.f32 %v273, %v419
        %v421 = vpop.f32.mrb[0].mxu0
        %v422 = vadd.f32 %v277, %v421
        %423 = vmatprep.mubr.f32.mxu0 0.0
        %424 = vmatmul.mubr.f32.gmra.mrb[0].mxu0 %v297
        %v425 = vpop.f32.mrb[0].mxu0
        %v426 = vadd.f32 %v273, %v425
        %v427 = vpop.f32.mrb[0].mxu0
        %v428 = vadd.f32 %v277, %v427
        %429 = vmatprep.mubr.f32.mxu0 0.0
        %430 = vmatmul.mubr.f32.gmra.mrb[0].mxu0 %v300
        %v431 = vpop.f32.mrb[0].mxu0
        %v432 = vadd.f32 %v273, %v431
        %v433 = vpop.f32.mrb[0].mxu0
        %v434 = vadd.f32 %v277, %v433
        %435 = vmatprep.mubr.f32.mxu0 0.0
        %436 = vmatmul.mubr.f32.gmra.mrb[0].mxu0 %v303
        %v437 = vpop.f32.mrb[0].mxu0
        %v438 = vadd.f32 %v273, %v437
        %v439 = vpop.f32.mrb[0].mxu0
        %v440 = vadd.f32 %v277, %v439
        %441 = vmatprep.mubr.f32.mxu0 0.0
        %442 = vmatmul.mubr.f32.gmra.mrb[0].mxu0 %v306
        %v443 = vpop.f32.mrb[0].mxu0
        %v444 = vadd.f32 %v273, %v443
        %v445 = vpop.f32.mrb[0].mxu0
        %v446 = vadd.f32 %v277, %v445
        %447 = vmatprep.mubr.f32.mxu0 0.0
        %448 = vmatmul.mubr.f32.gmra.mrb[0].mxu0 %v309
        %v449 = vpop.f32.mrb[0].mxu0
        %v450 = vadd.f32 %v273, %v449
        %v451 = vpop.f32.mrb[0].mxu0
        %v452 = vadd.f32 %v277, %v451
        %453 = vmatprep.mubr.f32.mxu0 0.0
        %454 = vmatmul.mubr.f32.gmra.mrb[0].mxu0 %v312
        %v455 = vpop.f32.mrb[0].mxu0
        %v456 = vadd.f32 %v273, %v455
        %v457 = vpop.f32.mrb[0].mxu0
        %v458 = vadd.f32 %v277, %v457
        %459 = vmatprep.mubr.f32.mxu0 0.0
        %460 = vmatmul.mubr.f32.gmra.mrb[0].mxu0 %v315
        %v461 = vpop.f32.mrb[0].mxu0
        %v462 = vadd.f32 %v273, %v461
        %v463 = vpop.f32.mrb[0].mxu0
        %v464 = vadd.f32 %v277, %v463
        %465 = vmatprep.mubr.f32.mxu0 0.0
        %466 = vmatmul.mubr.f32.gmra.mrb[0].mxu0 %v318
        %v467 = vpop.f32.mrb[0].mxu0
        %v468 = vadd.f32 %v273, %v467
        %v469 = vpop.f32.mrb[0].mxu0
        %v470 = vadd.f32 %v277, %v469
        %471 = vmatprep.mubr.f32.mxu0 0.0
        %472 = vmatmul.mubr.f32.gmra.mrb[0].mxu0 %v321
        %v473 = vpop.f32.mrb[0].mxu0
        %v474 = vadd.f32 %v273, %v473
        %v475 = vpop.f32.mrb[0].mxu0
        %v476 = vadd.f32 %v277, %v475
        %477 = vmatprep.mubr.f32.mxu0 0.0
        %478 = vmatmul.mubr.f32.gmra.mrb[0].mxu0 %v324
        %v479 = vpop.f32.mrb[0].mxu0
        %v480 = vadd.f32 %v273, %v479
        %v481 = vpop.f32.mrb[0].mxu0
        %v482 = vadd.f32 %v277, %v481
        %483 = vmatprep.mubr.f32.mxu0 0.0
        %484 = vmatmul.mubr.f32.gmra.mrb[0].mxu0 %v327
        %v485 = vpop.f32.mrb[0].mxu0
        %v486 = vadd.f32 %v273, %v485
        %v487 = vpop.f32.mrb[0].mxu0
        %v488 = vadd.f32 %v277, %v487
        %489 = vdwg.mxu0
        %v490 = vld [vmem:[%s3] sm:$0x1]
        %v492 = vlaneseq
        %v493 = vshrl.u32 %v492, 7
        %v494 = vsub.s32 0, %v493
        %v495 = vrot.slane %v490, %v494
        %v497 = vmul.f32 %v228, %v495
        %v498 = vmul.f32 %v229, %v495
        %v499 = vmul.f32 %v230, %v495
        %v500 = vmul.f32 %v231, %v495
        %v501 = vmul.f32 %v232, %v495
        %v502 = vmul.f32 %v233, %v495
        %v503 = vmul.f32 %v234, %v495
        %v504 = vmul.f32 %v235, %v495
        %v505 = vmul.f32 %v236, %v495
        %v506 = vmul.f32 %v237, %v495
        %v507 = vmul.f32 %v238, %v495
        %v508 = vmul.f32 %v239, %v495
        %v509 = vmul.f32 %v240, %v495
        %v510 = vmul.f32 %v241, %v495
        %v511 = vmul.f32 %v242, %v495
        %v512 = vmul.f32 %v243, %v495
        %v513 = vsel %vm280, %v497, 0.0
        %514 = vadd.xlane.f32.xlu0 %v513
        %v515 = vpop.xlane.xlu0 %514
        %v516 = vsel %vm280, %v498, 0.0
        %517 = vadd.xlane.f32.xlu0 %v516
        %v518 = vpop.xlane.xlu0 %517
        %v519 = vsel %vm280, %v499, 0.0
        %520 = vadd.xlane.f32.xlu0 %v519
        %v521 = vpop.xlane.xlu0 %520
        %v522 = vsel %vm280, %v500, 0.0
        %523 = vadd.xlane.f32.xlu0 %v522
        %v524 = vpop.xlane.xlu0 %523
        %v525 = vsel %vm280, %v501, 0.0
        %526 = vadd.xlane.f32.xlu0 %v525
        %v527 = vpop.xlane.xlu0 %526
        %v528 = vsel %vm280, %v502, 0.0
        %529 = vadd.xlane.f32.xlu0 %v528
        %v530 = vpop.xlane.xlu0 %529
        %v531 = vsel %vm280, %v503, 0.0
        %532 = vadd.xlane.f32.xlu0 %v531
        %v533 = vpop.xlane.xlu0 %532
        %v534 = vsel %vm280, %v504, 0.0
        %535 = vadd.xlane.f32.xlu0 %v534
        %v536 = vpop.xlane.xlu0 %535
        %v537 = vsel %vm280, %v505, 0.0
        %538 = vadd.xlane.f32.xlu0 %v537
        %v539 = vpop.xlane.xlu0 %538
        %v540 = vsel %vm280, %v506, 0.0
        %541 = vadd.xlane.f32.xlu0 %v540
        %v542 = vpop.xlane.xlu0 %541
        %v543 = vsel %vm280, %v507, 0.0
        %544 = vadd.xlane.f32.xlu0 %v543
        %v545 = vpop.xlane.xlu0 %544
        %v546 = vsel %vm280, %v508, 0.0
        %547 = vadd.xlane.f32.xlu0 %v546
        %v548 = vpop.xlane.xlu0 %547
        %v549 = vsel %vm280, %v509, 0.0
        %550 = vadd.xlane.f32.xlu0 %v549
        %v551 = vpop.xlane.xlu0 %550
        %v552 = vsel %vm280, %v510, 0.0
        %553 = vadd.xlane.f32.xlu0 %v552
        %v554 = vpop.xlane.xlu0 %553
        %v555 = vsel %vm280, %v511, 0.0
        %556 = vadd.xlane.f32.xlu0 %v555
        %v557 = vpop.xlane.xlu0 %556
        %v558 = vsel %vm280, %v512, 0.0
        %559 = vadd.xlane.f32.xlu0 %v558
        %v560 = vpop.xlane.xlu0 %559
        %v561 = vld [vmem:[#allocation2] sm:$0x1]
        %v563 = vlaneseq
        %v564 = vshrl.u32 %v563, 7
        %v565 = vsub.s32 0, %v564
        %v566 = vrot.slane %v561, %v565
        %v568 = vadd.f32 %v515, %v566
        %v569 = vadd.f32 %v518, %v566
        %v570 = vadd.f32 %v521, %v566
        %v571 = vadd.f32 %v524, %v566
        %v572 = vadd.f32 %v527, %v566
        %v573 = vadd.f32 %v530, %v566
        %v574 = vadd.f32 %v533, %v566
        %v575 = vadd.f32 %v536, %v566
        %v576 = vadd.f32 %v539, %v566
        %v577 = vadd.f32 %v542, %v566
        %v578 = vadd.f32 %v545, %v566
        %v579 = vadd.f32 %v548, %v566
        %v580 = vadd.f32 %v551, %v566
        %v581 = vadd.f32 %v554, %v566
        %v582 = vadd.f32 %v557, %v566
        %v583 = vadd.f32 %v560, %v566
        %v584 = vsub.f32 0.0, %v568
        %v585 = vsub.f32 0.0, %v569
        %v586 = vsub.f32 0.0, %v570
        %v587 = vsub.f32 0.0, %v571
        %v588 = vsub.f32 0.0, %v572
        %v589 = vsub.f32 0.0, %v573
        %v590 = vsub.f32 0.0, %v574
        %v591 = vsub.f32 0.0, %v575
        %v592 = vsub.f32 0.0, %v576
        %v593 = vsub.f32 0.0, %v577
        %v594 = vsub.f32 0.0, %v578
        %v595 = vsub.f32 0.0, %v579
        %v596 = vsub.f32 0.0, %v580
        %v597 = vsub.f32 0.0, %v581
        %v598 = vsub.f32 0.0, %v582
        %v599 = vsub.f32 0.0, %v583
        %v600 = vmul.f32 %v584, 1.442695
        %v601 = vpow.pop %v600
        %v602 = vmul.f32 %v585, 1.442695
        %v603 = vpow.pop %v602
        %v604 = vmul.f32 %v586, 1.442695
        %v605 = vpow.pop %v604
        %v606 = vmul.f32 %v587, 1.442695
        %v607 = vpow.pop %v606
        %v608 = vmul.f32 %v588, 1.442695
        %v609 = vpow.pop %v608
        %v610 = vmul.f32 %v589, 1.442695
        %v611 = vpow.pop %v610
        %v612 = vmul.f32 %v590, 1.442695
        %v613 = vpow.pop %v612
        %v614 = vmul.f32 %v591, 1.442695
        %v615 = vpow.pop %v614
        %v616 = vmul.f32 %v592, 1.442695
        %v617 = vpow.pop %v616
        %v618 = vmul.f32 %v593, 1.442695
        %v619 = vpow.pop %v618
        %v620 = vmul.f32 %v594, 1.442695
        %v621 = vpow.pop %v620
        %v622 = vmul.f32 %v595, 1.442695
        %v623 = vpow.pop %v622
        %v624 = vmul.f32 %v596, 1.442695
        %v625 = vpow.pop %v624
        %v626 = vmul.f32 %v597, 1.442695
        %v627 = vpow.pop %v626
        %v628 = vmul.f32 %v598, 1.442695
        %v629 = vpow.pop %v628
        %v630 = vmul.f32 %v599, 1.442695
        %v631 = vpow.pop %v630
        %v632 = vadd.f32 %v601, 1.0
        %v633 = vadd.f32 %v603, 1.0
        %v634 = vadd.f32 %v605, 1.0
        %v635 = vadd.f32 %v607, 1.0
        %v636 = vadd.f32 %v609, 1.0
        %v637 = vadd.f32 %v611, 1.0
        %v638 = vadd.f32 %v613, 1.0
        %v639 = vadd.f32 %v615, 1.0
        %v640 = vadd.f32 %v617, 1.0
        %v641 = vadd.f32 %v619, 1.0
        %v642 = vadd.f32 %v621, 1.0
        %v643 = vadd.f32 %v623, 1.0
        %v644 = vadd.f32 %v625, 1.0
        %v645 = vadd.f32 %v627, 1.0
        %v646 = vadd.f32 %v629, 1.0
        %v647 = vadd.f32 %v631, 1.0
        %v648 = vrcp.pop %v632
        %v649 = vmul.f32 1.0, %v648
        %v650 = vrcp.pop %v633
        %v651 = vmul.f32 1.0, %v650
        %v652 = vrcp.pop %v634
        %v653 = vmul.f32 1.0, %v652
        %v654 = vrcp.pop %v635
        %v655 = vmul.f32 1.0, %v654
        %v656 = vrcp.pop %v636
        %v657 = vmul.f32 1.0, %v656
        %v658 = vrcp.pop %v637
        %v659 = vmul.f32 1.0, %v658
        %v660 = vrcp.pop %v638
        %v661 = vmul.f32 1.0, %v660
        %v662 = vrcp.pop %v639
        %v663 = vmul.f32 1.0, %v662
        %v664 = vrcp.pop %v640
        %v665 = vmul.f32 1.0, %v664
        %v666 = vrcp.pop %v641
        %v667 = vmul.f32 1.0, %v666
        %v668 = vrcp.pop %v642
        %v669 = vmul.f32 1.0, %v668
        %v670 = vrcp.pop %v643
        %v671 = vmul.f32 1.0, %v670
        %v672 = vrcp.pop %v644
        %v673 = vmul.f32 1.0, %v672
        %v674 = vrcp.pop %v645
        %v675 = vmul.f32 1.0, %v674
        %v676 = vrcp.pop %v646
        %v677 = vmul.f32 1.0, %v676
        %v678 = vrcp.pop %v647
        %v679 = vmul.f32 1.0, %v678
        %v680 = vsub.f32 %v398, %v396
        %v681 = vsub.f32 %v404, %v402
        %v682 = vsub.f32 %v410, %v408
        %v683 = vsub.f32 %v416, %v414
        %v684 = vsub.f32 %v422, %v420
        %v685 = vsub.f32 %v428, %v426
        %v686 = vsub.f32 %v434, %v432
        %v687 = vsub.f32 %v440, %v438
        %v688 = vsub.f32 %v446, %v444
        %v689 = vsub.f32 %v452, %v450
        %v690 = vsub.f32 %v458, %v456
        %v691 = vsub.f32 %v464, %v462
        %v692 = vsub.f32 %v470, %v468
        %v693 = vsub.f32 %v476, %v474
        %v694 = vsub.f32 %v482, %v480
        %v695 = vsub.f32 %v488, %v486
        %697 = vset.pattern.permute.xlu0 0
        %698 = vperm.xlu0 %697, %v649
        %v699 = vpop.permute.xlu0 %698
        %702 = vset.pattern.permute.xlu0 0
        %703 = vperm.xlu0 %702, %v651
        %v704 = vpop.permute.xlu0 %703
        %707 = vset.pattern.permute.xlu0 0
        %708 = vperm.xlu0 %707, %v653
        %v709 = vpop.permute.xlu0 %708
        %712 = vset.pattern.permute.xlu0 0
        %713 = vperm.xlu0 %712, %v655
        %v714 = vpop.permute.xlu0 %713
        %717 = vset.pattern.permute.xlu0 0
        %718 = vperm.xlu0 %717, %v657
        %v719 = vpop.permute.xlu0 %718
        %722 = vset.pattern.permute.xlu0 0
        %723 = vperm.xlu0 %722, %v659
        %v724 = vpop.permute.xlu0 %723
        %727 = vset.pattern.permute.xlu0 0
        %728 = vperm.xlu0 %727, %v661
        %v729 = vpop.permute.xlu0 %728
        %732 = vset.pattern.permute.xlu0 0
        %733 = vperm.xlu0 %732, %v663
        %v734 = vpop.permute.xlu0 %733
        %737 = vset.pattern.permute.xlu0 0
        %738 = vperm.xlu0 %737, %v665
        %v739 = vpop.permute.xlu0 %738
        %742 = vset.pattern.permute.xlu0 0
        %743 = vperm.xlu0 %742, %v667
        %v744 = vpop.permute.xlu0 %743
        %747 = vset.pattern.permute.xlu0 0
        %748 = vperm.xlu0 %747, %v669
        %v749 = vpop.permute.xlu0 %748
        %752 = vset.pattern.permute.xlu0 0
        %753 = vperm.xlu0 %752, %v671
        %v754 = vpop.permute.xlu0 %753
        %757 = vset.pattern.permute.xlu0 0
        %758 = vperm.xlu0 %757, %v673
        %v759 = vpop.permute.xlu0 %758
        %762 = vset.pattern.permute.xlu0 0
        %763 = vperm.xlu0 %762, %v675
        %v764 = vpop.permute.xlu0 %763
        %767 = vset.pattern.permute.xlu0 0
        %768 = vperm.xlu0 %767, %v677
        %v769 = vpop.permute.xlu0 %768
        %772 = vset.pattern.permute.xlu0 0
        %773 = vperm.xlu0 %772, %v679
        %v774 = vpop.permute.xlu0 %773
        %v776 = vmul.f32 %v699, %v680
        %v777 = vmul.f32 %v704, %v681
        %v778 = vmul.f32 %v709, %v682
        %v779 = vmul.f32 %v714, %v683
        %v780 = vmul.f32 %v719, %v684
        %v781 = vmul.f32 %v724, %v685
        %v782 = vmul.f32 %v729, %v686
        %v783 = vmul.f32 %v734, %v687
        %v784 = vmul.f32 %v739, %v688
        %v785 = vmul.f32 %v744, %v689
        %v786 = vmul.f32 %v749, %v690
        %v787 = vmul.f32 %v754, %v691
        %v788 = vmul.f32 %v759, %v692
        %v789 = vmul.f32 %v764, %v693
        %v790 = vmul.f32 %v769, %v694
        %v791 = vmul.f32 %v774, %v695
        %v792 = vadd.f32 %v396, %v776
        %v793 = vadd.f32 %v402, %v777
        %v794 = vadd.f32 %v408, %v778
        %v795 = vadd.f32 %v414, %v779
        %v796 = vadd.f32 %v420, %v780
        %v797 = vadd.f32 %v426, %v781
        %v798 = vadd.f32 %v432, %v782
        %v799 = vadd.f32 %v438, %v783
        %v800 = vadd.f32 %v444, %v784
        %v801 = vadd.f32 %v450, %v785
        %v802 = vadd.f32 %v456, %v786
        %v803 = vadd.f32 %v462, %v787
        %v804 = vadd.f32 %v468, %v788
        %v805 = vadd.f32 %v474, %v789
        %v806 = vadd.f32 %v480, %v790
        %v807 = vadd.f32 %v486, %v791
        %808 = vst [vmem:[%s220] sm:$0xff] %v792
        %809 = vst [vmem:[%s220 + $0x8] sm:$0xff] %v793
        %810 = vst [vmem:[%s220 + $0x10] sm:$0xff] %v794
        %811 = vst [vmem:[%s220 + $0x18] sm:$0xff] %v795
        %812 = vst [vmem:[%s220 + $0x20] sm:$0xff] %v796
        %813 = vst [vmem:[%s220 + $0x28] sm:$0xff] %v797
        %814 = vst [vmem:[%s220 + $0x30] sm:$0xff] %v798
        %815 = vst [vmem:[%s220 + $0x38] sm:$0xff] %v799
        %816 = vst [vmem:[%s220 + $0x40] sm:$0xff] %v800
        %817 = vst [vmem:[%s220 + $0x48] sm:$0xff] %v801
        %818 = vst [vmem:[%s220 + $0x50] sm:$0xff] %v802
        %819 = vst [vmem:[%s220 + $0x58] sm:$0xff] %v803
        %820 = vst [vmem:[%s220 + $0x60] sm:$0xff] %v804
        %821 = vst [vmem:[%s220 + $0x68] sm:$0xff] %v805
        %822 = vst [vmem:[%s220 + $0x70] sm:$0xff] %v806
        %823 = vst [vmem:[%s220 + $0x78] sm:$0xff] %v807
        %s824 = sand.u32 %s139, 1
        %s825 = scalar_lea.sflag [#allocation4], %s824
        %s826 = sand.u32 %s139, 1
        %s827 = smul.addr %s826, 128
        %s828 = scalar_lea.vmem [#allocation3], %s827
        // Predicated region
        $region41: #{cgc_layer_slab.1} parent=39 // pred_check
          %p829 = pneg %p149
        $region42: #{cgc_layer_slab.1} parent=39 // pred_check_branch
          %831 = sbr.rel (%p829) target = $region44
        $region43: #{cgc_layer_slab.1} parent=39 // pred_region
          %s832 = smul.u32 16, %s21
          %s834 = ssub.s32 2048, 2048
          %835 = vsyncadd %s825, %s834
          %s836 = smul.addr %s832, 128
          %s837 = scalar_lea.hbm %s5, %s836
          %s838 = sshll.u32 %s828, 4
          %s839 = int_to_ptr.vmem [resolvable:$true] %s838
          %844 = dma.vmem_to_hbm [thread:$0]  %s839, 2048, %s837, %s825, 128, 128, 8
        $region44: #{cgc_layer_slab.1} parent=39 // pred_fallthru
          _
      $region40: #{cgc_layer_slab.1} parent=5 // pred_fallthru
        _
      %p845 = scmp.le.s32.totalorder 2, %s16
      // Predicated region
      $region45: #{cgc_layer_slab.1} parent=5 // pred_check
        %p846 = pneg %p845
      $region46: #{cgc_layer_slab.1} parent=5 // pred_check_branch
        %848 = sbr.rel (%p846) target = $region48
      $region47: #{cgc_layer_slab.1} parent=5 // pred_region
        %s849 = ssub.s32 %s16, 2
        // Predicated region
        $region49: #{cgc_layer_slab.1} parent=47 // pred_check
          %p850 = pneg %p155
        $region50: #{cgc_layer_slab.1} parent=47 // pred_check_branch
          %852 = sbr.rel (%p850) target = $region52
        $region51: #{cgc_layer_slab.1} parent=47 // pred_region
          %s853 = sand.u32 %s140, 1
          %s854 = scalar_lea.sflag [#allocation4], %s853
          %s855 = sand.u32 %s140, 1
          %s856 = smul.addr %s855, 128
          %s857 = scalar_lea.vmem [#allocation3], %s856
          %858 = dma.done %s854, 2048
        $region52: #{cgc_layer_slab.1} parent=47 // pred_fallthru
          _
      $region48: #{cgc_layer_slab.1} parent=5 // pred_fallthru
        _
    $region6: #{cgc_layer_slab.1} parent=1 // loop_footer
      %s20 = sadd.s32 1, %s16
    $region7: #{cgc_layer_slab.1} parent=1 // loop_footer_branch
      %15 = sbr.rel target = $region3
    $region8: #{cgc_layer_slab.1} parent=1 // loop_exit
      _
    %859 = vsyncpa [#allocation4], 1
    %s860 = scalar_lea.sflag [#allocation4], 1
    %861 = vsyncpa %s860, 1

</llo_original>
